<compile_context>
chip_gen: v7x
topology: tpu7x:2x2x1
jax: 0.10.0
libtpu: 0.0.40
codegen_flags: <defaults>
</compile_context>

<pallas_src>
import jax
import jax.numpy as jnp
from jax.experimental import pallas as pl
from jax.experimental.pallas import tpu as pltpu


def ealstm_kernel(xproj_ref, xs_ref, wsh_ref, bs_ref, whh_ref, wfc_ref, bfc_ref,
                  out_ref, hn_ref, cn_ref,
                  h_sc, c_sc, i_sc):
    """One (batch-tile, time-chunk) grid step of the EA-LSTM recurrence.

    xproj_ref: [TC, BT, 3H]  precomputed x_d @ W_ih + b, time-major
    xs_ref   : [BT, S]       static inputs
    wsh_ref  : [S, H]        static -> input gate
    bs_ref   : [1, H]        static (input-gate) bias
    whh_ref  : [H, 3H]       hidden -> (f, o, g) gates
    wfc_ref  : [1, H]        fc weight (transposed to a lane-wise row)
    bfc_ref  : [1]           fc bias (SMEM scalar)
    out_ref  : [BT, 1]       predictions (written on the last time chunk)
    hn_ref   : [TC, BT, H]   hidden states, time-major (dense slab stores)
    cn_ref   : [TC, BT, H]   cell states,  time-major (dense slab stores)
    h_sc/c_sc: [BT, H]       recurrent state carried across time chunks
    i_sc     : [BT, H]       static input gate (computed once per batch tile)
    """
    tc = pl.program_id(1)
    n_tc = pl.num_programs(1)
    t_chunk, _, gate_w = xproj_ref.shape
    H = gate_w // 3

    # Per-batch-tile init: zero state + static input gate (computed once).
    @pl.when(tc == 0)
    def _init():
        i_sc[...] = jax.nn.sigmoid(
            jnp.dot(xs_ref[...], wsh_ref[...],
                    preferred_element_type=jnp.float32)
            + bs_ref[...])
        h_sc[...] = jnp.zeros_like(h_sc)
        c_sc[...] = jnp.zeros_like(c_sc)

    w_hh = whh_ref[...]
    i_gate = i_sc[...]
    h = h_sc[...]
    c = c_sc[...]

    # Short, bounded unroll over the time chunk (static indices everywhere ->
    # dense slab loads/stores; LLO scheduler overlaps EUP work of step t with
    # the MXU push of step t+1).
    for t in range(t_chunk):
        gates = (jnp.dot(h, w_hh, preferred_element_type=jnp.float32)
                 + xproj_ref[t])                              # [BT, 3H]
        fo = jax.nn.sigmoid(gates[:, 0:2 * H])                # one wide sigmoid
        f = fo[:, 0:H]
        o = fo[:, H:2 * H]
        g = jnp.tanh(gates[:, 2 * H:3 * H])
        c = f * c + i_gate * g
        h = o * jnp.tanh(c)
        hn_ref[t] = h                                         # dense [BT, H] slab
        cn_ref[t] = c

    # Carry state to the next time chunk.
    h_sc[...] = h
    c_sc[...] = c

    # Dropout(p=0.0) is identity.  FC head (N=1) as VPU multiply + lane reduce
    # on the final time chunk only.
    @pl.when(tc == n_tc - 1)
    def _head():
        out_ref[...] = (jnp.sum(h * wfc_ref[...], axis=-1, keepdims=True)
                        + bfc_ref[0])


def model_forward(x_d, x_s, params, *, b_tile=None, t_chunk=None):
    """x_d: [B, T, D] float32, x_s: [B, S] float32. Returns (out, h_n, c_n)."""
    B, T, D = x_d.shape
    S = x_s.shape[1]
    H = params["w_hh"].shape[0]
    G = 3 * H

    if b_tile is None:
        b_tile = B if B <= 128 else 128
    if t_chunk is None:
        t_chunk = T
    assert B % b_tile == 0 and T % t_chunk == 0

    # Hoisted dynamic-input projection as one plain XLA GEMM, emitted directly
    # in time-major layout so the kernel never holds the padded D-lane axis
    # and every per-step gate fetch is a dense [BT, 3H] slab.
    x_proj_tm = (jnp.einsum("btd,dg->tbg", x_d, params["w_ih"])
                 + params["bias"])                            # [T, B, 3H]

    # Present the fc weight as a [1, H] row (lane-wise multiply + reduce head).
    w_fc_row = params["w_fc"].T                               # [1, H]

    grid = (B // b_tile, T // t_chunk)

    out, hn_tm, cn_tm = pl.pallas_call(
        ealstm_kernel,
        out_shape=(
            jax.ShapeDtypeStruct((B, 1), jnp.float32),
            jax.ShapeDtypeStruct((T, B, H), jnp.float32),     # time-major
            jax.ShapeDtypeStruct((T, B, H), jnp.float32),     # time-major
        ),
        grid=grid,
        in_specs=[
            pl.BlockSpec((t_chunk, b_tile, G), lambda b, tc: (tc, b, 0)),
            pl.BlockSpec((b_tile, S), lambda b, tc: (b, 0)),
            pl.BlockSpec((S, H), lambda b, tc: (0, 0)),
            pl.BlockSpec((1, H), lambda b, tc: (0, 0)),
            pl.BlockSpec((H, G), lambda b, tc: (0, 0)),
            pl.BlockSpec((1, H), lambda b, tc: (0, 0)),
            pl.BlockSpec(memory_space=pltpu.MemorySpace.SMEM),   # fc bias scalar
        ],
        out_specs=[
            pl.BlockSpec((b_tile, 1), lambda b, tc: (b, 0)),
            pl.BlockSpec((t_chunk, b_tile, H), lambda b, tc: (tc, b, 0)),
            pl.BlockSpec((t_chunk, b_tile, H), lambda b, tc: (tc, b, 0)),
        ],
        scratch_shapes=[
            pltpu.VMEM((b_tile, H), jnp.float32),   # h carry
            pltpu.VMEM((b_tile, H), jnp.float32),   # c carry
            pltpu.VMEM((b_tile, H), jnp.float32),   # static input gate
        ],
        compiler_params=pltpu.CompilerParams(
            dimension_semantics=("parallel", "arbitrary")),
    )(x_proj_tm, x_s, params["w_sh"], params["bias_s"], params["w_hh"],
      w_fc_row, params["b_fc"])

    # Restore the PyTorch [B, T, H] contract for h_n / c_n.
    h_n = jnp.transpose(hn_tm, (1, 0, 2))
    c_n = jnp.transpose(cn_tm, (1, 0, 2))
    return out, h_n, c_n


def reference_forward(x_d, x_s, params):
    """Pure-JAX reference mirroring the PyTorch EALSTM for validation."""
    B, T, D = x_d.shape
    H = params["w_hh"].shape[0]
    i_gate = jax.nn.sigmoid(x_s @ params["w_sh"] + params["bias_s"])
    h = jnp.zeros((B, H), jnp.float32)
    c = jnp.zeros((B, H), jnp.float32)
    hs, cs = [], []
    for t in range(T):
        gates = h @ params["w_hh"] + x_d[:, t, :] @ params["w_ih"] + params["bias"]
        f = jax.nn.sigmoid(gates[:, 0:H])
        o = jax.nn.sigmoid(gates[:, H:2 * H])
        g = jnp.tanh(gates[:, 2 * H:3 * H])
        c = f * c + i_gate * g
        h = o * jnp.tanh(c)
        hs.append(h)
        cs.append(c)
    h_n = jnp.stack(hs, axis=1)
    c_n = jnp.stack(cs, axis=1)
    out = h_n[:, -1, :] @ params["w_fc"] + params["b_fc"]
    return out, h_n, c_n


def init_params(key, input_size_dyn, input_size_stat, hidden_size,
                initial_forget_bias=5.0):
    """Deterministic parameter init (mirrors EALSTM reset_parameters style)."""
    k0, k1, k2 = jax.random.split(key, 3)
    H = hidden_size
    params = {
        "w_ih": 0.1 * jax.random.normal(k0, (input_size_dyn, 3 * H), jnp.float32),
        # PyTorch EALSTM initializes W_hh as three stacked identity blocks.
        "w_hh": jnp.concatenate([jnp.eye(H, dtype=jnp.float32)] * 3, axis=1),
        "w_sh": 0.1 * jax.random.normal(k1, (input_size_stat, H), jnp.float32),
        # Gate order is (f, o, g); forget-gate bias set to initial_forget_bias.
        "bias": jnp.zeros((1, 3 * H), jnp.float32).at[0, :H].set(initial_forget_bias),
        "bias_s": jnp.zeros((1, H), jnp.float32),
        "w_fc": 0.1 * jax.random.normal(k2, (H, 1), jnp.float32),
        "b_fc": jnp.zeros((1,), jnp.float32),
    }
    return params


if __name__ == "__main__":
    # Small shapes consistent with the module: batch=2, seq=8, dyn feats=5,
    # static feats=4, hidden=32.  t_chunk=4 exercises the cross-chunk state
    # carry (2 time chunks on the "arbitrary" grid axis).
    B, T, D, S, H = 2, 8, 5, 4, 32

    key = jax.random.PRNGKey(0)
    k_xd, k_xs, k_p = jax.random.split(key, 3)
    x_d = jax.random.normal(k_xd, (B, T, D), jnp.float32)
    x_s = jax.random.normal(k_xs, (B, S), jnp.float32)
    params = init_params(k_p, D, S, H, initial_forget_bias=5.0)

    out, h_n, c_n = model_forward(x_d, x_s, params, t_chunk=4)
    jax.block_until_ready((out, h_n, c_n))

    # Sanity check against pure-JAX reference.
    out_r, h_r, c_r = reference_forward(x_d, x_s, params)
    assert out.shape == (B, 1) and h_n.shape == (B, T, H) and c_n.shape == (B, T, H)
    assert jnp.allclose(out, out_r, atol=1e-5, rtol=1e-5)
    assert jnp.allclose(h_n, h_r, atol=1e-5, rtol=1e-5)
    assert jnp.allclose(c_n, c_r, atol=1e-5, rtol=1e-5)

    print("KERNEL_OK")
</pallas_src>

<mosaic_0001>
module attributes {stable_mosaic.version = 11 : i64} {
  func.func @ealstm_kernel(%arg0: i32, %arg1: i32, %arg2: memref<4x2x96xf32, #tpu.memory_space<vmem>>, %arg3: memref<2x4xf32, #tpu.memory_space<vmem>>, %arg4: memref<4x32xf32, #tpu.memory_space<vmem>>, %arg5: memref<1x32xf32, #tpu.memory_space<vmem>>, %arg6: memref<32x96xf32, #tpu.memory_space<vmem>>, %arg7: memref<1x32xf32, #tpu.memory_space<vmem>>, %arg8: memref<1xf32, #tpu.memory_space<smem>>, %arg9: memref<2x1xf32, #tpu.memory_space<vmem>>, %arg10: memref<4x2x32xf32, #tpu.memory_space<vmem>>, %arg11: memref<4x2x32xf32, #tpu.memory_space<vmem>>, %arg12: memref<2x32xf32, #tpu.memory_space<vmem>>, %arg13: memref<2x32xf32, #tpu.memory_space<vmem>>, %arg14: memref<2x32xf32, #tpu.memory_space<vmem>>) attributes {dimension_semantics = [#tpu.dimension_semantics<parallel>, #tpu.dimension_semantics<arbitrary>], iteration_bounds = array<i64: 1, 2>, scalar_prefetch = 0 : i64, scratch_operands = 3 : i64, tpu.core_type = #tpu.core_type<tc>, window_params = [{transform_indices = @transform_0, window_bounds = array<i64: 4, 2, 96>}, {transform_indices = @transform_1, window_bounds = array<i64: 2, 4>}, {pipeline_mode = #tpu.pipeline_mode<synchronous>, transform_indices = @transform_2, window_bounds = array<i64: 4, 32>}, {pipeline_mode = #tpu.pipeline_mode<synchronous>, transform_indices = @transform_3, window_bounds = array<i64: 1, 32>}, {pipeline_mode = #tpu.pipeline_mode<synchronous>, transform_indices = @transform_4, window_bounds = array<i64: 32, 96>}, {pipeline_mode = #tpu.pipeline_mode<synchronous>, transform_indices = @transform_5, window_bounds = array<i64: 1, 32>}, {transform_indices = @transform_6, window_bounds = array<i64: 1>}, {transform_indices = @transform_7, window_bounds = array<i64: 2, 1>}, {transform_indices = @transform_8, window_bounds = array<i64: 4, 2, 32>}, {transform_indices = @transform_9, window_bounds = array<i64: 4, 2, 32>}]} {
    %c0_i32 = arith.constant 0 : i32
    %0 = arith.cmpi eq, %arg1, %c0_i32 : i32
    %1 = arith.extui %0 : i1 to i32
    %c0_i32_0 = arith.constant 0 : i32
    %2 = arith.cmpi ne, %1, %c0_i32_0 : i32
    scf.if %2 {
      %c0_53 = arith.constant 0 : index
      %c0_54 = arith.constant 0 : index
      %112 = vector.load %arg3[%c0_53, %c0_54] : memref<2x4xf32, #tpu.memory_space<vmem>>, vector<2x4xf32>
      %c0_55 = arith.constant 0 : index
      %c0_56 = arith.constant 0 : index
      %113 = vector.load %arg4[%c0_55, %c0_56] : memref<4x32xf32, #tpu.memory_space<vmem>>, vector<4x32xf32>
      %cst_57 = arith.constant dense<0.000000e+00> : vector<2x32xf32>
      %114 = tpu.matmul %112, %113, %cst_57 {dimension_numbers = #tpu.dot_dimension_numbers<[1], [0], [0], [1], [0, 0, 1, 1], [], []>} : vector<2x4xf32>, vector<4x32xf32>, vector<2x32xf32> -> vector<2x32xf32>
      %c0_58 = arith.constant 0 : index
      %c0_59 = arith.constant 0 : index
      %115 = vector.load %arg5[%c0_58, %c0_59] : memref<1x32xf32, #tpu.memory_space<vmem>>, vector<1x32xf32>
      %116 = vector.broadcast %115 : vector<1x32xf32> to vector<2x32xf32>
      %117 = arith.addf %114, %116 : vector<2x32xf32>
      %118 = arith.negf %117 : vector<2x32xf32>
      %119 = math.exp %118 : vector<2x32xf32>
      %cst_60 = arith.constant 1.000000e+00 : f32
      %120 = vector.broadcast %cst_60 : f32 to vector<2x32xf32>
      %121 = arith.addf %120, %119 : vector<2x32xf32>
      %122 = arith.divf %120, %121 : vector<2x32xf32>
      %c0_61 = arith.constant 0 : index
      %c0_62 = arith.constant 0 : index
      %123 = vector.load %arg14[%c0_61, %c0_62] : memref<2x32xf32, #tpu.memory_space<vmem>>, vector<2x32xf32>
      tpu.vector_store %arg14[%c0_61, %c0_62], %122 {strides = array<i32>} : memref<2x32xf32, #tpu.memory_space<vmem>>, vector<2x32xf32>,
      %cst_63 = arith.constant 0.000000e+00 : f32
      %124 = vector.broadcast %cst_63 : f32 to vector<2x32xf32>
      %c0_64 = arith.constant 0 : index
      %c0_65 = arith.constant 0 : index
      %125 = vector.load %arg12[%c0_64, %c0_65] : memref<2x32xf32, #tpu.memory_space<vmem>>, vector<2x32xf32>
      tpu.vector_store %arg12[%c0_64, %c0_65], %124 {strides = array<i32>} : memref<2x32xf32, #tpu.memory_space<vmem>>, vector<2x32xf32>,
      %cst_66 = arith.constant 0.000000e+00 : f32
      %126 = vector.broadcast %cst_66 : f32 to vector<2x32xf32>
      %c0_67 = arith.constant 0 : index
      %c0_68 = arith.constant 0 : index
      %127 = vector.load %arg13[%c0_67, %c0_68] : memref<2x32xf32, #tpu.memory_space<vmem>>, vector<2x32xf32>
      tpu.vector_store %arg13[%c0_67, %c0_68], %126 {strides = array<i32>} : memref<2x32xf32, #tpu.memory_space<vmem>>, vector<2x32xf32>,
    } else {
    }
    %c0 = arith.constant 0 : index
    %c0_1 = arith.constant 0 : index
    %3 = vector.load %arg6[%c0, %c0_1] : memref<32x96xf32, #tpu.memory_space<vmem>>, vector<32x96xf32>
    %c0_2 = arith.constant 0 : index
    %c0_3 = arith.constant 0 : index
    %4 = vector.load %arg14[%c0_2, %c0_3] : memref<2x32xf32, #tpu.memory_space<vmem>>, vector<2x32xf32>
    %c0_4 = arith.constant 0 : index
    %c0_5 = arith.constant 0 : index
    %5 = vector.load %arg12[%c0_4, %c0_5] : memref<2x32xf32, #tpu.memory_space<vmem>>, vector<2x32xf32>
    %c0_6 = arith.constant 0 : index
    %c0_7 = arith.constant 0 : index
    %6 = vector.load %arg13[%c0_6, %c0_7] : memref<2x32xf32, #tpu.memory_space<vmem>>, vector<2x32xf32>
    %cst = arith.constant dense<0.000000e+00> : vector<2x96xf32>
    %7 = tpu.matmul %5, %3, %cst {dimension_numbers = #tpu.dot_dimension_numbers<[1], [0], [0], [1], [0, 0, 1, 1], [], []>} : vector<2x32xf32>, vector<32x96xf32>, vector<2x96xf32> -> vector<2x96xf32>
    %c0_8 = arith.constant 0 : index
    %c0_9 = arith.constant 0 : index
    %c0_10 = arith.constant 0 : index
    %8 = vector.load %arg2[%c0_8, %c0_9, %c0_10] : memref<4x2x96xf32, #tpu.memory_space<vmem>>, vector<1x2x96xf32>
    %9 = vector.shape_cast %8 : vector<1x2x96xf32> to vector<2x96xf32>
    %10 = arith.addf %7, %9 : vector<2x96xf32>
    %11 = vector.extract_strided_slice %10 {offsets = [0, 0], sizes = [2, 64], strides = [1, 1]} : vector<2x96xf32> to vector<2x64xf32>
    %12 = arith.negf %11 : vector<2x64xf32>
    %13 = math.exp %12 : vector<2x64xf32>
    %cst_11 = arith.constant 1.000000e+00 : f32
    %14 = vector.broadcast %cst_11 : f32 to vector<2x64xf32>
    %15 = arith.addf %14, %13 : vector<2x64xf32>
    %16 = arith.divf %14, %15 : vector<2x64xf32>
    %17 = vector.extract_strided_slice %16 {offsets = [0, 0], sizes = [2, 32], strides = [1, 1]} : vector<2x64xf32> to vector<2x32xf32>
    %18 = vector.extract_strided_slice %16 {offsets = [0, 32], sizes = [2, 32], strides = [1, 1]} : vector<2x64xf32> to vector<2x32xf32>
    %19 = vector.extract_strided_slice %10 {offsets = [0, 64], sizes = [2, 32], strides = [1, 1]} : vector<2x96xf32> to vector<2x32xf32>
    %20 = math.tanh %19 : vector<2x32xf32>
    %21 = arith.mulf %17, %6 : vector<2x32xf32>
    %22 = arith.mulf %4, %20 : vector<2x32xf32>
    %23 = arith.addf %21, %22 : vector<2x32xf32>
    %24 = math.tanh %23 : vector<2x32xf32>
    %25 = arith.mulf %18, %24 : vector<2x32xf32>
    %c0_12 = arith.constant 0 : index
    %c0_13 = arith.constant 0 : index
    %c0_14 = arith.constant 0 : index
    %26 = vector.load %arg10[%c0_12, %c0_13, %c0_14] : memref<4x2x32xf32, #tpu.memory_space<vmem>>, vector<1x2x32xf32>
    %27 = vector.shape_cast %26 : vector<1x2x32xf32> to vector<2x32xf32>
    %28 = vector.shape_cast %25 : vector<2x32xf32> to vector<1x2x32xf32>
    tpu.vector_store %arg10[%c0_12, %c0_13, %c0_14], %28 {strides = array<i32>} : memref<4x2x32xf32, #tpu.memory_space<vmem>>, vector<1x2x32xf32>,
    %c0_15 = arith.constant 0 : index
    %c0_16 = arith.constant 0 : index
    %c0_17 = arith.constant 0 : index
    %29 = vector.load %arg11[%c0_15, %c0_16, %c0_17] : memref<4x2x32xf32, #tpu.memory_space<vmem>>, vector<1x2x32xf32>
    %30 = vector.shape_cast %29 : vector<1x2x32xf32> to vector<2x32xf32>
    %31 = vector.shape_cast %23 : vector<2x32xf32> to vector<1x2x32xf32>
    tpu.vector_store %arg11[%c0_15, %c0_16, %c0_17], %31 {strides = array<i32>} : memref<4x2x32xf32, #tpu.memory_space<vmem>>, vector<1x2x32xf32>,
    %cst_18 = arith.constant dense<0.000000e+00> : vector<2x96xf32>
    %32 = tpu.matmul %25, %3, %cst_18 {dimension_numbers = #tpu.dot_dimension_numbers<[1], [0], [0], [1], [0, 0, 1, 1], [], []>} : vector<2x32xf32>, vector<32x96xf32>, vector<2x96xf32> -> vector<2x96xf32>
    %c1 = arith.constant 1 : index
    %c0_19 = arith.constant 0 : index
    %c0_20 = arith.constant 0 : index
    %33 = vector.load %arg2[%c1, %c0_19, %c0_20] : memref<4x2x96xf32, #tpu.memory_space<vmem>>, vector<1x2x96xf32>
    %34 = vector.shape_cast %33 : vector<1x2x96xf32> to vector<2x96xf32>
    %35 = arith.addf %32, %34 : vector<2x96xf32>
    %36 = vector.extract_strided_slice %35 {offsets = [0, 0], sizes = [2, 64], strides = [1, 1]} : vector<2x96xf32> to vector<2x64xf32>
    %37 = arith.negf %36 : vector<2x64xf32>
    %38 = math.exp %37 : vector<2x64xf32>
    %cst_21 = arith.constant 1.000000e+00 : f32
    %39 = vector.broadcast %cst_21 : f32 to vector<2x64xf32>
    %40 = arith.addf %39, %38 : vector<2x64xf32>
    %41 = arith.divf %39, %40 : vector<2x64xf32>
    %42 = vector.extract_strided_slice %41 {offsets = [0, 0], sizes = [2, 32], strides = [1, 1]} : vector<2x64xf32> to vector<2x32xf32>
    %43 = vector.extract_strided_slice %41 {offsets = [0, 32], sizes = [2, 32], strides = [1, 1]} : vector<2x64xf32> to vector<2x32xf32>
    %44 = vector.extract_strided_slice %35 {offsets = [0, 64], sizes = [2, 32], strides = [1, 1]} : vector<2x96xf32> to vector<2x32xf32>
    %45 = math.tanh %44 : vector<2x32xf32>
    %46 = arith.mulf %42, %23 : vector<2x32xf32>
    %47 = arith.mulf %4, %45 : vector<2x32xf32>
    %48 = arith.addf %46, %47 : vector<2x32xf32>
    %49 = math.tanh %48 : vector<2x32xf32>
    %50 = arith.mulf %43, %49 : vector<2x32xf32>
    %c1_22 = arith.constant 1 : index
    %c0_23 = arith.constant 0 : index
    %c0_24 = arith.constant 0 : index
    %51 = vector.load %arg10[%c1_22, %c0_23, %c0_24] : memref<4x2x32xf32, #tpu.memory_space<vmem>>, vector<1x2x32xf32>
    %52 = vector.shape_cast %51 : vector<1x2x32xf32> to vector<2x32xf32>
    %53 = vector.shape_cast %50 : vector<2x32xf32> to vector<1x2x32xf32>
    tpu.vector_store %arg10[%c1_22, %c0_23, %c0_24], %53 {strides = array<i32>} : memref<4x2x32xf32, #tpu.memory_space<vmem>>, vector<1x2x32xf32>,
    %c1_25 = arith.constant 1 : index
    %c0_26 = arith.constant 0 : index
    %c0_27 = arith.constant 0 : index
    %54 = vector.load %arg11[%c1_25, %c0_26, %c0_27] : memref<4x2x32xf32, #tpu.memory_space<vmem>>, vector<1x2x32xf32>
    %55 = vector.shape_cast %54 : vector<1x2x32xf32> to vector<2x32xf32>
    %56 = vector.shape_cast %48 : vector<2x32xf32> to vector<1x2x32xf32>
    tpu.vector_store %arg11[%c1_25, %c0_26, %c0_27], %56 {strides = array<i32>} : memref<4x2x32xf32, #tpu.memory_space<vmem>>, vector<1x2x32xf32>,
    %cst_28 = arith.constant dense<0.000000e+00> : vector<2x96xf32>
    %57 = tpu.matmul %50, %3, %cst_28 {dimension_numbers = #tpu.dot_dimension_numbers<[1], [0], [0], [1], [0, 0, 1, 1], [], []>} : vector<2x32xf32>, vector<32x96xf32>, vector<2x96xf32> -> vector<2x96xf32>
    %c2 = arith.constant 2 : index
    %c0_29 = arith.constant 0 : index
    %c0_30 = arith.constant 0 : index
    %58 = vector.load %arg2[%c2, %c0_29, %c0_30] : memref<4x2x96xf32, #tpu.memory_space<vmem>>, vector<1x2x96xf32>
    %59 = vector.shape_cast %58 : vector<1x2x96xf32> to vector<2x96xf32>
    %60 = arith.addf %57, %59 : vector<2x96xf32>
    %61 = vector.extract_strided_slice %60 {offsets = [0, 0], sizes = [2, 64], strides = [1, 1]} : vector<2x96xf32> to vector<2x64xf32>
    %62 = arith.negf %61 : vector<2x64xf32>
    %63 = math.exp %62 : vector<2x64xf32>
    %cst_31 = arith.constant 1.000000e+00 : f32
    %64 = vector.broadcast %cst_31 : f32 to vector<2x64xf32>
    %65 = arith.addf %64, %63 : vector<2x64xf32>
    %66 = arith.divf %64, %65 : vector<2x64xf32>
    %67 = vector.extract_strided_slice %66 {offsets = [0, 0], sizes = [2, 32], strides = [1, 1]} : vector<2x64xf32> to vector<2x32xf32>
    %68 = vector.extract_strided_slice %66 {offsets = [0, 32], sizes = [2, 32], strides = [1, 1]} : vector<2x64xf32> to vector<2x32xf32>
    %69 = vector.extract_strided_slice %60 {offsets = [0, 64], sizes = [2, 32], strides = [1, 1]} : vector<2x96xf32> to vector<2x32xf32>
    %70 = math.tanh %69 : vector<2x32xf32>
    %71 = arith.mulf %67, %48 : vector<2x32xf32>
    %72 = arith.mulf %4, %70 : vector<2x32xf32>
    %73 = arith.addf %71, %72 : vector<2x32xf32>
    %74 = math.tanh %73 : vector<2x32xf32>
    %75 = arith.mulf %68, %74 : vector<2x32xf32>
    %c2_32 = arith.constant 2 : index
    %c0_33 = arith.constant 0 : index
    %c0_34 = arith.constant 0 : index
    %76 = vector.load %arg10[%c2_32, %c0_33, %c0_34] : memref<4x2x32xf32, #tpu.memory_space<vmem>>, vector<1x2x32xf32>
    %77 = vector.shape_cast %76 : vector<1x2x32xf32> to vector<2x32xf32>
    %78 = vector.shape_cast %75 : vector<2x32xf32> to vector<1x2x32xf32>
    tpu.vector_store %arg10[%c2_32, %c0_33, %c0_34], %78 {strides = array<i32>} : memref<4x2x32xf32, #tpu.memory_space<vmem>>, vector<1x2x32xf32>,
    %c2_35 = arith.constant 2 : index
    %c0_36 = arith.constant 0 : index
    %c0_37 = arith.constant 0 : index
    %79 = vector.load %arg11[%c2_35, %c0_36, %c0_37] : memref<4x2x32xf32, #tpu.memory_space<vmem>>, vector<1x2x32xf32>
    %80 = vector.shape_cast %79 : vector<1x2x32xf32> to vector<2x32xf32>
    %81 = vector.shape_cast %73 : vector<2x32xf32> to vector<1x2x32xf32>
    tpu.vector_store %arg11[%c2_35, %c0_36, %c0_37], %81 {strides = array<i32>} : memref<4x2x32xf32, #tpu.memory_space<vmem>>, vector<1x2x32xf32>,
    %cst_38 = arith.constant dense<0.000000e+00> : vector<2x96xf32>
    %82 = tpu.matmul %75, %3, %cst_38 {dimension_numbers = #tpu.dot_dimension_numbers<[1], [0], [0], [1], [0, 0, 1, 1], [], []>} : vector<2x32xf32>, vector<32x96xf32>, vector<2x96xf32> -> vector<2x96xf32>
    %c3 = arith.constant 3 : index
    %c0_39 = arith.constant 0 : index
    %c0_40 = arith.constant 0 : index
    %83 = vector.load %arg2[%c3, %c0_39, %c0_40] : memref<4x2x96xf32, #tpu.memory_space<vmem>>, vector<1x2x96xf32>
    %84 = vector.shape_cast %83 : vector<1x2x96xf32> to vector<2x96xf32>
    %85 = arith.addf %82, %84 : vector<2x96xf32>
    %86 = vector.extract_strided_slice %85 {offsets = [0, 0], sizes = [2, 64], strides = [1, 1]} : vector<2x96xf32> to vector<2x64xf32>
    %87 = arith.negf %86 : vector<2x64xf32>
    %88 = math.exp %87 : vector<2x64xf32>
    %cst_41 = arith.constant 1.000000e+00 : f32
    %89 = vector.broadcast %cst_41 : f32 to vector<2x64xf32>
    %90 = arith.addf %89, %88 : vector<2x64xf32>
    %91 = arith.divf %89, %90 : vector<2x64xf32>
    %92 = vector.extract_strided_slice %91 {offsets = [0, 0], sizes = [2, 32], strides = [1, 1]} : vector<2x64xf32> to vector<2x32xf32>
    %93 = vector.extract_strided_slice %91 {offsets = [0, 32], sizes = [2, 32], strides = [1, 1]} : vector<2x64xf32> to vector<2x32xf32>
    %94 = vector.extract_strided_slice %85 {offsets = [0, 64], sizes = [2, 32], strides = [1, 1]} : vector<2x96xf32> to vector<2x32xf32>
    %95 = math.tanh %94 : vector<2x32xf32>
    %96 = arith.mulf %92, %73 : vector<2x32xf32>
    %97 = arith.mulf %4, %95 : vector<2x32xf32>
    %98 = arith.addf %96, %97 : vector<2x32xf32>
    %99 = math.tanh %98 : vector<2x32xf32>
    %100 = arith.mulf %93, %99 : vector<2x32xf32>
    %c3_42 = arith.constant 3 : index
    %c0_43 = arith.constant 0 : index
    %c0_44 = arith.constant 0 : index
    %101 = vector.load %arg10[%c3_42, %c0_43, %c0_44] : memref<4x2x32xf32, #tpu.memory_space<vmem>>, vector<1x2x32xf32>
    %102 = vector.shape_cast %101 : vector<1x2x32xf32> to vector<2x32xf32>
    %103 = vector.shape_cast %100 : vector<2x32xf32> to vector<1x2x32xf32>
    tpu.vector_store %arg10[%c3_42, %c0_43, %c0_44], %103 {strides = array<i32>} : memref<4x2x32xf32, #tpu.memory_space<vmem>>, vector<1x2x32xf32>,
    %c3_45 = arith.constant 3 : index
    %c0_46 = arith.constant 0 : index
    %c0_47 = arith.constant 0 : index
    %104 = vector.load %arg11[%c3_45, %c0_46, %c0_47] : memref<4x2x32xf32, #tpu.memory_space<vmem>>, vector<1x2x32xf32>
    %105 = vector.shape_cast %104 : vector<1x2x32xf32> to vector<2x32xf32>
    %106 = vector.shape_cast %98 : vector<2x32xf32> to vector<1x2x32xf32>
    tpu.vector_store %arg11[%c3_45, %c0_46, %c0_47], %106 {strides = array<i32>} : memref<4x2x32xf32, #tpu.memory_space<vmem>>, vector<1x2x32xf32>,
    %c0_48 = arith.constant 0 : index
    %c0_49 = arith.constant 0 : index
    %107 = vector.load %arg12[%c0_48, %c0_49] : memref<2x32xf32, #tpu.memory_space<vmem>>, vector<2x32xf32>
    tpu.vector_store %arg12[%c0_48, %c0_49], %100 {strides = array<i32>} : memref<2x32xf32, #tpu.memory_space<vmem>>, vector<2x32xf32>,
    %c0_50 = arith.constant 0 : index
    %c0_51 = arith.constant 0 : index
    %108 = vector.load %arg13[%c0_50, %c0_51] : memref<2x32xf32, #tpu.memory_space<vmem>>, vector<2x32xf32>
    tpu.vector_store %arg13[%c0_50, %c0_51], %98 {strides = array<i32>} : memref<2x32xf32, #tpu.memory_space<vmem>>, vector<2x32xf32>,
    %c1_i32 = arith.constant 1 : i32
    %109 = arith.cmpi eq, %arg1, %c1_i32 : i32
    %110 = arith.extui %109 : i1 to i32
    %c0_i32_52 = arith.constant 0 : i32
    %111 = arith.cmpi ne, %110, %c0_i32_52 : i32
    scf.if %111 {
      %c0_53 = arith.constant 0 : index
      %c0_54 = arith.constant 0 : index
      %112 = vector.load %arg7[%c0_53, %c0_54] : memref<1x32xf32, #tpu.memory_space<vmem>>, vector<1x32xf32>
      %113 = vector.broadcast %112 : vector<1x32xf32> to vector<2x32xf32>
      %114 = arith.mulf %100, %113 : vector<2x32xf32>
      %cst_55 = arith.constant dense<0.000000e+00> : vector<2xf32>
      %115 = vector.multi_reduction <add>, %114, %cst_55 [1] : vector<2x32xf32> to vector<2xf32>
      %116 = vector.shape_cast %115 : vector<2xf32> to vector<2x1xf32>
      %c0_56 = arith.constant 0 : index
      %117 = memref.load %arg8[%c0_56] : memref<1xf32, #tpu.memory_space<smem>>
      %118 = vector.broadcast %117 : f32 to vector<2x1xf32>
      %119 = arith.addf %116, %118 : vector<2x1xf32>
      %c0_57 = arith.constant 0 : index
      %c0_58 = arith.constant 0 : index
      %120 = vector.load %arg9[%c0_57, %c0_58] : memref<2x1xf32, #tpu.memory_space<vmem>>, vector<2x1xf32>
      tpu.vector_store %arg9[%c0_57, %c0_58], %119 {strides = array<i32>} : memref<2x1xf32, #tpu.memory_space<vmem>>, vector<2x1xf32>,
    } else {
    }
    return
  }
  func.func @transform_0(%arg0: i32, %arg1: i32) -> (i32, i32, i32) {
    %c0_i32 = arith.constant 0 : i32
    %c0_i32_0 = arith.constant 0 : i32
    return %arg1, %arg0, %c0_i32 : i32, i32, i32
  }
  func.func @transform_1(%arg0: i32, %arg1: i32) -> (i32, i32) {
    %c0_i32 = arith.constant 0 : i32
    %c0_i32_0 = arith.constant 0 : i32
    return %arg0, %c0_i32 : i32, i32
  }
  func.func @transform_2(%arg0: i32, %arg1: i32) -> (i32, i32) {
    %c0_i32 = arith.constant 0 : i32
    %c0_i32_0 = arith.constant 0 : i32
    %c0_i32_1 = arith.constant 0 : i32
    return %c0_i32, %c0_i32_0 : i32, i32
  }
  func.func @transform_3(%arg0: i32, %arg1: i32) -> (i32, i32) {
    %c0_i32 = arith.constant 0 : i32
    %c0_i32_0 = arith.constant 0 : i32
    %c0_i32_1 = arith.constant 0 : i32
    return %c0_i32, %c0_i32_0 : i32, i32
  }
  func.func @transform_4(%arg0: i32, %arg1: i32) -> (i32, i32) {
    %c0_i32 = arith.constant 0 : i32
    %c0_i32_0 = arith.constant 0 : i32
    %c0_i32_1 = arith.constant 0 : i32
    return %c0_i32, %c0_i32_0 : i32, i32
  }
  func.func @transform_5(%arg0: i32, %arg1: i32) -> (i32, i32) {
    %c0_i32 = arith.constant 0 : i32
    %c0_i32_0 = arith.constant 0 : i32
    %c0_i32_1 = arith.constant 0 : i32
    return %c0_i32, %c0_i32_0 : i32, i32
  }
  func.func @transform_6(%arg0: i32, %arg1: i32) -> i32 {
    %c0_i32 = arith.constant 0 : i32
    %c0_i32_0 = arith.constant 0 : i32
    return %c0_i32 : i32
  }
  func.func @transform_7(%arg0: i32, %arg1: i32) -> (i32, i32) {
    %c0_i32 = arith.constant 0 : i32
    %c0_i32_0 = arith.constant 0 : i32
    return %arg0, %c0_i32 : i32, i32
  }
  func.func @transform_8(%arg0: i32, %arg1: i32) -> (i32, i32, i32) {
    %c0_i32 = arith.constant 0 : i32
    %c0_i32_0 = arith.constant 0 : i32
    return %arg1, %arg0, %c0_i32 : i32, i32, i32
  }
  func.func @transform_9(%arg0: i32, %arg1: i32) -> (i32, i32, i32) {
    %c0_i32 = arith.constant 0 : i32
    %c0_i32_0 = arith.constant 0 : i32
    return %arg1, %arg0, %c0_i32 : i32, i32, i32
  }
}

</mosaic_0001>

<llo_original>
// kernel: tpu_custom_call.1
$region0: #{tpu_custom_call.1}
  #allocation0 [shape = 'u32[]', space=smem, size = 0x4, offset = 0x4, fixed_abs, tag = 'smem constant byte address 0x4 - core index']
  #allocation1 [shape = 'u32[144,128]{1,0:T(1,128)}', space=vmem, size = 0x12000, scoped, tag = 'internal scratch']
  #allocation2 [shape = 'f32[2,32]{1,0:T(2,128)}', space=vmem, size = 0x400, scoped, tag = 'scratch operand']
  #allocation3 [shape = 'f32[2,32]{1,0:T(2,128)}', space=vmem, size = 0x400, scoped, tag = 'scratch operand']
  #allocation4 [shape = 'f32[2,32]{1,0:T(2,128)}', space=vmem, size = 0x400, scoped, tag = 'scratch operand']
  #allocation5 [shape = 'f32[1]{0:T(128)S(6)}', space=smem, size = 0x200, scoped, tag = 'scoped memory for tpu_custom_call.1']
  %s0 = inlined_call_operand.hbm [shape: f32[8,2,96], index: 0, kind: input, shape index: {}]
  %s1 = inlined_call_operand.vmem [shape: f32[2,4], index: 1, kind: input, shape index: {}]
  %s2 = inlined_call_operand.vmem [shape: f32[4,32], index: 2, kind: input, shape index: {}]
  %s3 = inlined_call_operand.vmem [shape: f32[1,32], index: 3, kind: input, shape index: {}]
  %s4 = inlined_call_operand.hbm [shape: f32[32,96], index: 4, kind: input, shape index: {}]
  %s5 = inlined_call_operand.vmem [shape: f32[1,32], index: 5, kind: input, shape index: {}]
  %s6 = inlined_call_operand.<no memory space> [shape: f32[1], index: 6, kind: input, shape index: {}]
  %s7 = inlined_call_operand.vmem [shape: f32[2,1], index: 7, kind: output, shape index: {0}]
  %s8 = inlined_call_operand.hbm [shape: f32[8,2,32], index: 8, kind: output, shape index: {1}]
  %s9 = inlined_call_operand.hbm [shape: f32[8,2,32], index: 9, kind: output, shape index: {2}]
  %10 = xla_tuple %s7, %s8, %s9
  %s11 = sld [smem:[#allocation0]]
  $region93: #{tpu_custom_call.1} parent=0
    _
  %s13 = ssub.s32 1, %s11
  %s14 = scalar_select 0, %s13, %s11
  %15 = sst [smem:[#allocation5]] %s6
  $region1: #{tpu_custom_call.1} parent=0
    #allocation6 [shape = 'u8[8192]{0}', space=vmem, size = 0x2000, scoped, tag = 'input window, operand 0']
    #allocation7 [shape = 's32[2]{0}', space=sflag, size = 0x8, scoped, tag = 'scoped memory for tpu_custom_call.1']
    #allocation8 [shape = 's32[2]{0}', space=sflag, size = 0x8, scoped, tag = 'scoped memory for tpu_custom_call.1']
    #allocation9 [shape = 'u8[16384]{0}', space=vmem, size = 0x4000, scoped, tag = 'input window, operand 4, single buffered']
    #allocation10 [shape = 's32[1]{0}', space=sflag, size = 0x4, scoped, tag = 'scoped memory for tpu_custom_call.1']
    #allocation11 [shape = 'u8[8192]{0}', space=vmem, size = 0x2000, scoped, tag = 'output window, operand 1']
    #allocation12 [shape = 'u8[8192]{0}', space=vmem, size = 0x2000, scoped, tag = 'output window, operand 2']
    #allocation13 [shape = 's32[2]{0}', space=sflag, size = 0x8, scoped, tag = 'scoped memory for tpu_custom_call.1']
    %16 = vsyncpa [#allocation7], 0
    %s17 = scalar_lea.sflag [#allocation7], 1
    %18 = vsyncpa %s17, 0
    %19 = vsyncpa [#allocation10], 0
    %20 = vsyncpa [#allocation8], 0
    %s21 = scalar_lea.sflag [#allocation8], 1
    %22 = vsyncpa %s21, 0
    %23 = vsyncpa [#allocation13], 0
    %s24 = scalar_lea.sflag [#allocation13], 1
    %25 = vsyncpa %s24, 0
    loop: start=0, step=1, limit=4
    $region2: #{tpu_custom_call.1} parent=1 // loop_pre_header
      _
    $region3: #{tpu_custom_call.1} parent=1 // loop_header
      %s27 = sphi 0, %s31
      %p28 = scmp.ge.s32.totalorder %s27, 4
      %s34 = sphi 0, %s46
      %s35 = sphi 0, %s42
      %s36 = sphi 0, %s34
      %s37 = sphi 0, %s35
      %s38 = sphi 0, %s36
      %s39 = sphi 0, %s37
      %s51 = sphi 0, %s53
      %s54 = sphi 0, %s51
      %s55 = sphi 0, %s54
      %s71 = sphi 0, %s55
      %s77 = sphi 0, %s79
      %s80 = sphi 0, %s77
      %s81 = sphi 0, %s80
      %s97 = sphi 0, %s81
      %s101 = sphi 0, %s101
      %s103 = sphi 0, %s101
      %s104 = sphi 0, %s103
      %s118 = sphi 0, %s104
      %s122 = sphi 0, %s122
      %s124 = sphi 0, %s122
      %s125 = sphi 0, %s124
      %s139 = sphi 0, %s125
      %s143 = sphi 0, %s143
      %s145 = sphi 0, %s143
      %s146 = sphi 0, %s145
      %s160 = sphi 0, %s146
      %s164 = sphi 0, %s164
      %s166 = sphi 0, %s164
      %s167 = sphi 0, %s166
      %s181 = sphi 0, %s167
      %s185 = sphi 0, %s185
      %s187 = sphi 0, %s185
      %s188 = sphi 0, %s187
      %s202 = sphi 0, %s188
      %s208 = sphi 0, %s210
      %s211 = sphi 0, %s208
      %s212 = sphi 0, %s211
      %s228 = sphi 0, %s212
      %s236 = sphi 0, %s238
      %s239 = sphi 0, %s236
      %s240 = sphi 0, %s239
      %s256 = sphi 0, %s240
      %s264 = sphi 0, %s266
      %s267 = sphi 0, %s264
      %s268 = sphi 0, %s267
      %s284 = sphi 0, %s268
    $region4: #{tpu_custom_call.1} parent=1 // loop_header_branch
      %30 = sbr.rel (%p28) target = $region8
    $region5: #{tpu_custom_call.1} parent=1 // loop_body
      %s32 = ssub.s32 %s27, 1
      %s33 = ssub.s32 %s27, 2
      %s40 = sadd.s32 1, %s35
      %p41 = scmp.ge.s32.totalorder %s40, 2
      %s42 = scalar_select %p41, 0, %s40
      %s43 = sadd.s32 1, %s34
      %s44 = scalar_select %p41, %s43, %s34
      %p45 = scmp.ge.s32.totalorder %s44, 1
      %s46 = scalar_select %p45, 0, %s44
      %s47 = ssub.s32 %s35, %s42
      %s48 = ssub.s32 %s34, %s46
      %s49 = sor.u32 %s47, %s48
      %p50 = scmp.eq.s32.totalorder %s49, 0
      %s52 = sadd.s32 %s51, 1
      %s53 = scalar_select %p50, %s51, %s52
      %p56 = pneg %p50
      %p57 = scmp.eq.s32.totalorder %s27, 1
      %p58 = por %p56, %p57
      %p59 = scmp.ne.s32.totalorder %s51, %s54
      %p60 = scmp.eq.s32.totalorder %s27, 0
      %p61 = por %p59, %p60
      %p62 = scmp.ne.s32.totalorder %s51, %s54
      %p63 = scmp.eq.s32.totalorder %s32, 1
      %p64 = por %p62, %p63
      %p65 = scmp.ne.s32.totalorder %s54, %s55
      %p66 = scmp.eq.s32.totalorder %s32, 0
      %p67 = por %p65, %p66
      %p68 = scmp.ne.s32.totalorder %s54, %s55
      %p69 = scmp.eq.s32.totalorder %s33, 1
      %p70 = por %p68, %p69
      %p72 = scmp.ne.s32.totalorder %s55, %s71
      %p73 = scmp.eq.s32.totalorder %s33, 0
      %p74 = por %p72, %p73
      %s75 = ssub.s32 %s34, %s46
      %p76 = scmp.eq.s32.totalorder %s75, 0
      %s78 = sadd.s32 %s77, 1
      %s79 = scalar_select %p76, %s77, %s78
      %p82 = pneg %p76
      %p83 = scmp.eq.s32.totalorder %s27, 1
      %p84 = por %p82, %p83
      %p85 = scmp.ne.s32.totalorder %s77, %s80
      %p86 = scmp.eq.s32.totalorder %s27, 0
      %p87 = por %p85, %p86
      %p88 = scmp.ne.s32.totalorder %s77, %s80
      %p89 = scmp.eq.s32.totalorder %s32, 1
      %p90 = por %p88, %p89
      %p91 = scmp.ne.s32.totalorder %s80, %s81
      %p92 = scmp.eq.s32.totalorder %s32, 0
      %p93 = por %p91, %p92
      %p94 = scmp.ne.s32.totalorder %s80, %s81
      %p95 = scmp.eq.s32.totalorder %s33, 1
      %p96 = por %p94, %p95
      %p98 = scmp.ne.s32.totalorder %s81, %s97
      %p99 = scmp.eq.s32.totalorder %s33, 0
      %p100 = por %p98, %p99
      %s102 = sadd.s32 %s101, 1
      %p105 = scmp.eq.s32.totalorder %s27, 1
      %p106 = scmp.ne.s32.totalorder %s101, %s103
      %p107 = scmp.eq.s32.totalorder %s27, 0
      %p108 = por %p106, %p107
      %p109 = scmp.ne.s32.totalorder %s101, %s103
      %p110 = scmp.eq.s32.totalorder %s32, 1
      %p111 = por %p109, %p110
      %p112 = scmp.ne.s32.totalorder %s103, %s104
      %p113 = scmp.eq.s32.totalorder %s32, 0
      %p114 = por %p112, %p113
      %p115 = scmp.ne.s32.totalorder %s103, %s104
      %p116 = scmp.eq.s32.totalorder %s33, 1
      %p117 = por %p115, %p116
      %p119 = scmp.ne.s32.totalorder %s104, %s118
      %p120 = scmp.eq.s32.totalorder %s33, 0
      %p121 = por %p119, %p120
      %s123 = sadd.s32 %s122, 1
      %p126 = scmp.eq.s32.totalorder %s27, 1
      %p127 = scmp.ne.s32.totalorder %s122, %s124
      %p128 = scmp.eq.s32.totalorder %s27, 0
      %p129 = por %p127, %p128
      %p130 = scmp.ne.s32.totalorder %s122, %s124
      %p131 = scmp.eq.s32.totalorder %s32, 1
      %p132 = por %p130, %p131
      %p133 = scmp.ne.s32.totalorder %s124, %s125
      %p134 = scmp.eq.s32.totalorder %s32, 0
      %p135 = por %p133, %p134
      %p136 = scmp.ne.s32.totalorder %s124, %s125
      %p137 = scmp.eq.s32.totalorder %s33, 1
      %p138 = por %p136, %p137
      %p140 = scmp.ne.s32.totalorder %s125, %s139
      %p141 = scmp.eq.s32.totalorder %s33, 0
      %p142 = por %p140, %p141
      %s144 = sadd.s32 %s143, 1
      %p147 = scmp.eq.s32.totalorder %s27, 1
      %p148 = scmp.ne.s32.totalorder %s143, %s145
      %p149 = scmp.eq.s32.totalorder %s27, 0
      %p150 = por %p148, %p149
      %p151 = scmp.ne.s32.totalorder %s143, %s145
      %p152 = scmp.eq.s32.totalorder %s32, 1
      %p153 = por %p151, %p152
      %p154 = scmp.ne.s32.totalorder %s145, %s146
      %p155 = scmp.eq.s32.totalorder %s32, 0
      %p156 = por %p154, %p155
      %p157 = scmp.ne.s32.totalorder %s145, %s146
      %p158 = scmp.eq.s32.totalorder %s33, 1
      %p159 = por %p157, %p158
      %p161 = scmp.ne.s32.totalorder %s146, %s160
      %p162 = scmp.eq.s32.totalorder %s33, 0
      %p163 = por %p161, %p162
      %s165 = sadd.s32 %s164, 1
      %p168 = scmp.eq.s32.totalorder %s27, 1
      %p169 = scmp.ne.s32.totalorder %s164, %s166
      %p170 = scmp.eq.s32.totalorder %s27, 0
      %p171 = por %p169, %p170
      %p172 = scmp.ne.s32.totalorder %s164, %s166
      %p173 = scmp.eq.s32.totalorder %s32, 1
      %p174 = por %p172, %p173
      %p175 = scmp.ne.s32.totalorder %s166, %s167
      %p176 = scmp.eq.s32.totalorder %s32, 0
      %p177 = por %p175, %p176
      %p178 = scmp.ne.s32.totalorder %s166, %s167
      %p179 = scmp.eq.s32.totalorder %s33, 1
      %p180 = por %p178, %p179
      %p182 = scmp.ne.s32.totalorder %s167, %s181
      %p183 = scmp.eq.s32.totalorder %s33, 0
      %p184 = por %p182, %p183
      %s186 = sadd.s32 %s185, 1
      %p189 = scmp.eq.s32.totalorder %s27, 1
      %p190 = scmp.ne.s32.totalorder %s185, %s187
      %p191 = scmp.eq.s32.totalorder %s27, 0
      %p192 = por %p190, %p191
      %p193 = scmp.ne.s32.totalorder %s185, %s187
      %p194 = scmp.eq.s32.totalorder %s32, 1
      %p195 = por %p193, %p194
      %p196 = scmp.ne.s32.totalorder %s187, %s188
      %p197 = scmp.eq.s32.totalorder %s32, 0
      %p198 = por %p196, %p197
      %p199 = scmp.ne.s32.totalorder %s187, %s188
      %p200 = scmp.eq.s32.totalorder %s33, 1
      %p201 = por %p199, %p200
      %p203 = scmp.ne.s32.totalorder %s188, %s202
      %p204 = scmp.eq.s32.totalorder %s33, 0
      %p205 = por %p203, %p204
      %s206 = ssub.s32 %s34, %s46
      %p207 = scmp.eq.s32.totalorder %s206, 0
      %s209 = sadd.s32 %s208, 1
      %s210 = scalar_select %p207, %s208, %s209
      %p213 = pneg %p207
      %p214 = scmp.eq.s32.totalorder %s27, 1
      %p215 = por %p213, %p214
      %p216 = scmp.ne.s32.totalorder %s208, %s211
      %p217 = scmp.eq.s32.totalorder %s27, 0
      %p218 = por %p216, %p217
      %p219 = scmp.ne.s32.totalorder %s208, %s211
      %p220 = scmp.eq.s32.totalorder %s32, 1
      %p221 = por %p219, %p220
      %p222 = scmp.ne.s32.totalorder %s211, %s212
      %p223 = scmp.eq.s32.totalorder %s32, 0
      %p224 = por %p222, %p223
      %p225 = scmp.ne.s32.totalorder %s211, %s212
      %p226 = scmp.eq.s32.totalorder %s33, 1
      %p227 = por %p225, %p226
      %p229 = scmp.ne.s32.totalorder %s212, %s228
      %p230 = scmp.eq.s32.totalorder %s33, 0
      %p231 = por %p229, %p230
      %s232 = ssub.s32 %s35, %s42
      %s233 = ssub.s32 %s34, %s46
      %s234 = sor.u32 %s232, %s233
      %p235 = scmp.eq.s32.totalorder %s234, 0
      %s237 = sadd.s32 %s236, 1
      %s238 = scalar_select %p235, %s236, %s237
      %p241 = pneg %p235
      %p242 = scmp.eq.s32.totalorder %s27, 1
      %p243 = por %p241, %p242
      %p244 = scmp.ne.s32.totalorder %s236, %s239
      %p245 = scmp.eq.s32.totalorder %s27, 0
      %p246 = por %p244, %p245
      %p247 = scmp.ne.s32.totalorder %s236, %s239
      %p248 = scmp.eq.s32.totalorder %s32, 1
      %p249 = por %p247, %p248
      %p250 = scmp.ne.s32.totalorder %s239, %s240
      %p251 = scmp.eq.s32.totalorder %s32, 0
      %p252 = por %p250, %p251
      %p253 = scmp.ne.s32.totalorder %s239, %s240
      %p254 = scmp.eq.s32.totalorder %s33, 1
      %p255 = por %p253, %p254
      %p257 = scmp.ne.s32.totalorder %s240, %s256
      %p258 = scmp.eq.s32.totalorder %s33, 0
      %p259 = por %p257, %p258
      %s260 = ssub.s32 %s35, %s42
      %s261 = ssub.s32 %s34, %s46
      %s262 = sor.u32 %s260, %s261
      %p263 = scmp.eq.s32.totalorder %s262, 0
      %s265 = sadd.s32 %s264, 1
      %s266 = scalar_select %p263, %s264, %s265
      %p269 = pneg %p263
      %p270 = scmp.eq.s32.totalorder %s27, 1
      %p271 = por %p269, %p270
      %p272 = scmp.ne.s32.totalorder %s264, %s267
      %p273 = scmp.eq.s32.totalorder %s27, 0
      %p274 = por %p272, %p273
      %p275 = scmp.ne.s32.totalorder %s264, %s267
      %p276 = scmp.eq.s32.totalorder %s32, 1
      %p277 = por %p275, %p276
      %p278 = scmp.ne.s32.totalorder %s267, %s268
      %p279 = scmp.eq.s32.totalorder %s32, 0
      %p280 = por %p278, %p279
      %p281 = scmp.ne.s32.totalorder %s267, %s268
      %p282 = scmp.eq.s32.totalorder %s33, 1
      %p283 = por %p281, %p282
      %p285 = scmp.ne.s32.totalorder %s268, %s284
      %p286 = scmp.eq.s32.totalorder %s33, 0
      %p287 = por %p285, %p286
      %p288 = scmp.le.s32.totalorder 1, %s27
      %p289 = scmp.lt.s32.totalorder %s27, 3
      %p290 = pnand %p288, %p289
      %p291 = pneg %p290
      // Predicated region
      $region9: #{tpu_custom_call.1} parent=5 // pred_check
        _
      $region10: #{tpu_custom_call.1} parent=5 // pred_check_branch
        %293 = sbr.rel (%p290) target = $region12
      $region11: #{tpu_custom_call.1} parent=5 // pred_region
        %s294 = ssub.s32 %s27, 1
        // Predicated region
        $region13: #{tpu_custom_call.1} parent=11 // pred_check
          %p295 = pneg %p93
        $region14: #{tpu_custom_call.1} parent=11 // pred_check_branch
          %297 = sbr.rel (%p295) target = $region16
        $region15: #{tpu_custom_call.1} parent=11 // pred_region
          %p298 = scmp.lt.s32.totalorder %s36, 0
          %s299 = scalar_select %p298, %s36, 0
          %s300 = smul.addr %s299, 2
          %s301 = scalar_lea.vmem %s1, %s300
        $region16: #{tpu_custom_call.1} parent=11 // pred_fallthru
          _
        // Predicated region
        $region17: #{tpu_custom_call.1} parent=11 // pred_check
          %p302 = pneg %p114
        $region18: #{tpu_custom_call.1} parent=11 // pred_check_branch
          %304 = sbr.rel (%p302) target = $region20
        $region19: #{tpu_custom_call.1} parent=11 // pred_region
          _
        $region20: #{tpu_custom_call.1} parent=11 // pred_fallthru
          _
        // Predicated region
        $region21: #{tpu_custom_call.1} parent=11 // pred_check
          %p305 = pneg %p135
        $region22: #{tpu_custom_call.1} parent=11 // pred_check_branch
          %307 = sbr.rel (%p305) target = $region24
        $region23: #{tpu_custom_call.1} parent=11 // pred_region
          _
        $region24: #{tpu_custom_call.1} parent=11 // pred_fallthru
          _
        // Predicated region
        $region25: #{tpu_custom_call.1} parent=11 // pred_check
          %p308 = pneg %p156
        $region26: #{tpu_custom_call.1} parent=11 // pred_check_branch
          %310 = sbr.rel (%p308) target = $region28
        $region27: #{tpu_custom_call.1} parent=11 // pred_region
          %s312 = ssub.s32 512, 512
          %313 = vsyncadd [#allocation10], %s312
          %s314 = sshll.u32 [#allocation9], 4
          %s315 = int_to_ptr.vmem [resolvable:$true] %s314
          %320 = dma.hbm_to_vmem [thread:$0]  %s4, 512, %s315, [#allocation10], 128, 128, 8
        $region28: #{tpu_custom_call.1} parent=11 // pred_fallthru
          _
        // Predicated region
        $region29: #{tpu_custom_call.1} parent=11 // pred_check
          %p321 = pneg %p177
        $region30: #{tpu_custom_call.1} parent=11 // pred_check_branch
          %323 = sbr.rel (%p321) target = $region32
        $region31: #{tpu_custom_call.1} parent=11 // pred_region
          _
        $region32: #{tpu_custom_call.1} parent=11 // pred_fallthru
          _
        // Predicated region
        $region33: #{tpu_custom_call.1} parent=11 // pred_check
          %p324 = pneg %p198
        $region34: #{tpu_custom_call.1} parent=11 // pred_check_branch
          %326 = sbr.rel (%p324) target = $region36
        $region35: #{tpu_custom_call.1} parent=11 // pred_region
          _
        $region36: #{tpu_custom_call.1} parent=11 // pred_fallthru
          _
      $region12: #{tpu_custom_call.1} parent=5 // pred_fallthru
        _
      %p327 = scmp.lt.s32.totalorder %s27, 2
      // Predicated region
      $region37: #{tpu_custom_call.1} parent=5 // pred_check
        %p328 = pneg %p327
      $region38: #{tpu_custom_call.1} parent=5 // pred_check_branch
        %330 = sbr.rel (%p328) target = $region40
      $region39: #{tpu_custom_call.1} parent=5 // pred_region
        // Predicated region
        $region41: #{tpu_custom_call.1} parent=39 // pred_check
          %p331 = pneg %p61
        $region42: #{tpu_custom_call.1} parent=39 // pred_check_branch
          %333 = sbr.rel (%p331) target = $region44
        $region43: #{tpu_custom_call.1} parent=39 // pred_region
          %s334 = sand.u32 %s51, 1
          %s335 = scalar_lea.sflag [#allocation7], %s334
          %s336 = sand.u32 %s51, 1
          %s337 = smul.addr %s336, 8
          %s338 = scalar_lea.vmem [#allocation6], %s337
          %s339 = smul.u32 4, %s35
          %s341 = ssub.s32 128, 128
          %342 = vsyncadd %s335, %s341
          %s343 = sadd.s32 %s34, %s339
          %s344 = smul.addr %s343, 32
          %s345 = scalar_lea.hbm %s0, %s344
          %s346 = sshll.u32 %s338, 4
          %s347 = int_to_ptr.vmem [resolvable:$true] %s346
          %352 = dma.hbm_to_vmem [thread:$0]  %s345, 128, %s347, %s335, 32, 32, 2
        $region44: #{tpu_custom_call.1} parent=39 // pred_fallthru
          _
      $region40: #{tpu_custom_call.1} parent=5 // pred_fallthru
        _
      %p353 = scmp.le.s32.totalorder 1, %s27
      %p354 = scmp.lt.s32.totalorder %s27, 3
      %p355 = pnand %p353, %p354
      %p356 = pneg %p355
      // Predicated region
      $region45: #{tpu_custom_call.1} parent=5 // pred_check
        _
      $region46: #{tpu_custom_call.1} parent=5 // pred_check_branch
        %358 = sbr.rel (%p355) target = $region48
      $region47: #{tpu_custom_call.1} parent=5 // pred_region
        %s359 = ssub.s32 %s27, 1
        %s360 = sand.u32 %s54, 1
        %s361 = scalar_lea.sflag [#allocation7], %s360
        %s362 = sand.u32 %s54, 1
        %s363 = smul.addr %s362, 8
        %s364 = scalar_lea.vmem [#allocation6], %s363
        // Predicated region
        $region49: #{tpu_custom_call.1} parent=47 // pred_check
          %p365 = pneg %p67
        $region50: #{tpu_custom_call.1} parent=47 // pred_check_branch
          %367 = sbr.rel (%p365) target = $region52
        $region51: #{tpu_custom_call.1} parent=47 // pred_region
          %368 = dma.done %s361, 128
        $region52: #{tpu_custom_call.1} parent=47 // pred_fallthru
          _
        // Predicated region
        $region53: #{tpu_custom_call.1} parent=47 // pred_check
          %p369 = pneg %p156
        $region54: #{tpu_custom_call.1} parent=47 // pred_check_branch
          %371 = sbr.rel (%p369) target = $region56
        $region55: #{tpu_custom_call.1} parent=47 // pred_region
          %372 = dma.done [#allocation10], 512
        $region56: #{tpu_custom_call.1} parent=47 // pred_fallthru
          _
        %s373 = sand.u32 %s54, 1
        %s374 = scalar_lea.sflag [#allocation7], %s373
        %s375 = sand.u32 %s54, 1
        %s376 = smul.addr %s375, 8
        %s377 = scalar_lea.vmem [#allocation6], %s376
        %p378 = pneg %p67
        %p379 = pneg %p64
        %p380 = scmp.lt.s32.totalorder %s36, 0
        %s381 = scalar_select %p380, %s36, 0
        %s382 = smul.addr %s381, 2
        %s383 = scalar_lea.vmem %s1, %s382
        %p384 = pneg %p93
        %p385 = pneg %p90
        %p386 = pneg %p114
        %p387 = pneg %p111
        %p388 = pneg %p135
        %p389 = pneg %p132
        %p390 = pneg %p156
        %p391 = pneg %p153
        %p392 = pneg %p177
        %p393 = pneg %p174
        %p394 = pneg %p198
        %p395 = pneg %p195
        %p396 = pneg %p224
        %p397 = pneg %p221
        %p398 = scmp.lt.s32.totalorder %s36, 0
        %s399 = scalar_select %p398, %s36, 0
        %s400 = smul.addr %s399, 2
        %s401 = scalar_lea.vmem %s7, %s400
        %p402 = pneg %p252
        %p403 = pneg %p249
        %s404 = sand.u32 %s239, 1
        %s405 = scalar_lea.sflag [#allocation8], %s404
        %s406 = sand.u32 %s239, 1
        %s407 = smul.addr %s406, 8
        %s408 = scalar_lea.vmem [#allocation11], %s407
        %p409 = pneg %p280
        %p410 = pneg %p277
        %s411 = sand.u32 %s267, 1
        %s412 = scalar_lea.sflag [#allocation13], %s411
        %s413 = sand.u32 %s267, 1
        %s414 = smul.addr %s413, 8
        %s415 = scalar_lea.vmem [#allocation12], %s414
        %s416 = smul.u32 4, %s37
        %p417 = scmp.lt.s32.totalorder %s36, 0
        %s418 = scalar_select %p417, %s36, 0
        %s419 = smul.addr %s418, 2
        %s420 = scalar_lea.vmem %s1, %s419
        %p421 = scmp.lt.s32.totalorder %s36, 0
        %s422 = scalar_select %p421, %s36, 0
        %s423 = smul.addr %s422, 2
        %s424 = scalar_lea.vmem %s7, %s423
        %s425 = smul.u32 4, %s37
        %s426 = smul.u32 4, %s37
        %p427 = scmp.eq.s32.totalorder %s37, 0
        // Predicated region
        $region57: #{tpu_custom_call.1} parent=47 // pred_check
          %p428 = pneg %p427
        $region58: #{tpu_custom_call.1} parent=47 // pred_check_branch
          %430 = sbr.rel (%p428) target = $region60
        $region59: #{tpu_custom_call.1} parent=47 // pred_region
          %v431 = vld [vmem:[%s420] sm:$0x3]
          %v432 = vld [vmem:[%s2] sm:$0xf]
          %v433 = vld [vmem:[%s3] sm:$0x1]
          %v435 = vlaneseq
          %v436 = vshrl.u32 %v435, 7
          %v437 = vsub.s32 0, %v436
          %v438 = vrot.slane %v433, %v437
          %vm440 = vcmask 31744
          %v442 = vsel %vm440, %v431, 0
          %vm444 = vcmask 1043456
          %v446 = vsel %vm444, %v432, 0
          %448 = vmatprep.subr.mxu0 0.0
          %449 = vmatpush1.msra.mxu0 %v446
          %450 = vmatprep.subr.mxu0 0.0
          %451 = vmatpush1.msra.mxu0 0.0
          %452 = vmatprep.subr.mxu0 0.0
          %453 = vmatpush1.msra.mxu0 0.0
          %454 = vmatprep.subr.mxu0 0.0
          %455 = vmatpush1.msra.mxu0 0.0
          %456 = vmatprep.subr.mxu0 0.0
          %457 = vmatpush1.msra.mxu0 0.0
          %458 = vmatprep.subr.mxu0 0.0
          %459 = vmatpush1.msra.mxu0 0.0
          %460 = vmatprep.subr.mxu0 0.0
          %461 = vmatpush1.msra.mxu0 0.0
          %462 = vmatprep.subr.mxu0 0.0
          %463 = vmatpush1.msra.mxu0 0.0
          %464 = vmatprep.subr.mxu0 0.0
          %465 = vmatpush1.msra.mxu0 0.0
          %466 = vmatprep.subr.mxu0 0.0
          %467 = vmatpush1.msra.mxu0 0.0
          %468 = vmatprep.subr.mxu0 0.0
          %469 = vmatpush1.msra.mxu0 0.0
          %470 = vmatprep.subr.mxu0 0.0
          %471 = vmatpush1.msra.mxu0 0.0
          %472 = vmatprep.subr.mxu0 0.0
          %473 = vmatpush1.msra.mxu0 0.0
          %474 = vmatprep.subr.mxu0 0.0
          %475 = vmatpush1.msra.mxu0 0.0
          %476 = vmatprep.subr.mxu0 0.0
          %477 = vmatpush1.msra.mxu0 0.0
          %478 = vmatprep.subr.mxu0 0.0
          %479 = vmatpush1.msra.mxu0 0.0
          %480 = vmatprep.subr.mxu0 0.0
          %481 = vmatpush1.msra.mxu0 0.0
          %482 = vmatprep.subr.mxu0 0.0
          %483 = vmatpush1.msra.mxu0 0.0
          %484 = vmatprep.subr.mxu0 0.0
          %485 = vmatpush1.msra.mxu0 0.0
          %486 = vmatprep.subr.mxu0 0.0
          %487 = vmatpush1.msra.mxu0 0.0
          %488 = vmatprep.subr.mxu0 0.0
          %489 = vmatpush1.msra.mxu0 0.0
          %490 = vmatprep.subr.mxu0 0.0
          %491 = vmatpush1.msra.mxu0 0.0
          %492 = vmatprep.subr.mxu0 0.0
          %493 = vmatpush1.msra.mxu0 0.0
          %494 = vmatprep.subr.mxu0 0.0
          %495 = vmatpush1.msra.mxu0 0.0
          %496 = vmatprep.subr.mxu0 0.0
          %497 = vmatpush1.msra.mxu0 0.0
          %498 = vmatprep.subr.mxu0 0.0
          %499 = vmatpush1.msra.mxu0 0.0
          %500 = vmatprep.subr.mxu0 0.0
          %501 = vmatpush1.msra.mxu0 0.0
          %502 = vmatprep.subr.mxu0 0.0
          %503 = vmatpush1.msra.mxu0 0.0
          %504 = vmatprep.subr.mxu0 0.0
          %505 = vmatpush1.msra.mxu0 0.0
          %506 = vmatprep.subr.mxu0 0.0
          %507 = vmatpush1.msra.mxu0 0.0
          %508 = vmatprep.subr.mxu0 0.0
          %509 = vmatpush1.msra.mxu0 0.0
          %510 = vmatprep.subr.mxu0 0.0
          %511 = vmatpush1.msra.mxu0 0.0
          %512 = vmatprep.mubr.f32.mxu0 0.0
          %513 = vmatmul.mubr.f32.gmra.mrb[0].mxu0 %v442
          %v514 = vpop.f32.mrb[0].mxu0
          %v515 = vadd.f32 %v438, %v514
          %v516 = vpop.f32.mrb[0].mxu0
          %517 = vdwg.mxu0
          %v518 = vxor.u32 %v515, 2147483648
          %v519 = vmul.f32 %v518, 1.442695
          %v520 = vpow.pop %v519
          %v521 = vadd.f32 %v520, 1.0
          %v522 = vrcp.pop %v521
          %v523 = vmul.f32 1.0, %v522
          %vm524 = vcmask 254976
          %525 = vst.msk [vmem:[#allocation4] sm:$0x3] %vm524, %v523
          %526 = vst.msk [vmem:[#allocation2] sm:$0x3] %vm524, 0.0
          %527 = vst.msk [vmem:[#allocation3] sm:$0x3] %vm524, 0.0
        $region60: #{tpu_custom_call.1} parent=47 // pred_fallthru
          _
        %v528 = vld [vmem:[#allocation9] sm:$0xff]
        %v529 = vld [vmem:[#allocation9 + $0x8] sm:$0xff]
        %v530 = vld [vmem:[#allocation9 + $0x10] sm:$0xff]
        %v531 = vld [vmem:[#allocation9 + $0x18] sm:$0xff]
        %v532 = vld [vmem:[#allocation4] sm:$0x3]
        %v533 = vld [vmem:[#allocation2] sm:$0x3]
        %v534 = vld [vmem:[#allocation3] sm:$0x3]
        %v535 = vld [vmem:[%s364] sm:$0x3]
        %vm536 = vcmask 261120
        %v538 = vsel %vm536, %v533, 0
        %540 = vmatprep.subr.mxu0 0.0
        %541 = vmatpush1.msra.mxu0 %v528
        %542 = vmatprep.subr.mxu0 0.0
        %543 = vmatpush1.msra.mxu0 %v529
        %544 = vmatprep.subr.mxu0 0.0
        %545 = vmatpush1.msra.mxu0 %v530
        %546 = vmatprep.subr.mxu0 0.0
        %547 = vmatpush1.msra.mxu0 %v531
        %548 = vmatprep.subr.mxu0 0.0
        %549 = vmatpush1.msra.mxu0 0.0
        %550 = vmatprep.subr.mxu0 0.0
        %551 = vmatpush1.msra.mxu0 0.0
        %552 = vmatprep.subr.mxu0 0.0
        %553 = vmatpush1.msra.mxu0 0.0
        %554 = vmatprep.subr.mxu0 0.0
        %555 = vmatpush1.msra.mxu0 0.0
        %556 = vmatprep.subr.mxu0 0.0
        %557 = vmatpush1.msra.mxu0 0.0
        %558 = vmatprep.subr.mxu0 0.0
        %559 = vmatpush1.msra.mxu0 0.0
        %560 = vmatprep.subr.mxu0 0.0
        %561 = vmatpush1.msra.mxu0 0.0
        %562 = vmatprep.subr.mxu0 0.0
        %563 = vmatpush1.msra.mxu0 0.0
        %564 = vmatprep.subr.mxu0 0.0
        %565 = vmatpush1.msra.mxu0 0.0
        %566 = vmatprep.subr.mxu0 0.0
        %567 = vmatpush1.msra.mxu0 0.0
        %568 = vmatprep.subr.mxu0 0.0
        %569 = vmatpush1.msra.mxu0 0.0
        %570 = vmatprep.subr.mxu0 0.0
        %571 = vmatpush1.msra.mxu0 0.0
        %572 = vmatprep.subr.mxu0 0.0
        %573 = vmatpush1.msra.mxu0 0.0
        %574 = vmatprep.subr.mxu0 0.0
        %575 = vmatpush1.msra.mxu0 0.0
        %576 = vmatprep.subr.mxu0 0.0
        %577 = vmatpush1.msra.mxu0 0.0
        %578 = vmatprep.subr.mxu0 0.0
        %579 = vmatpush1.msra.mxu0 0.0
        %580 = vmatprep.subr.mxu0 0.0
        %581 = vmatpush1.msra.mxu0 0.0
        %582 = vmatprep.subr.mxu0 0.0
        %583 = vmatpush1.msra.mxu0 0.0
        %584 = vmatprep.subr.mxu0 0.0
        %585 = vmatpush1.msra.mxu0 0.0
        %586 = vmatprep.subr.mxu0 0.0
        %587 = vmatpush1.msra.mxu0 0.0
        %588 = vmatprep.subr.mxu0 0.0
        %589 = vmatpush1.msra.mxu0 0.0
        %590 = vmatprep.subr.mxu0 0.0
        %591 = vmatpush1.msra.mxu0 0.0
        %592 = vmatprep.subr.mxu0 0.0
        %593 = vmatpush1.msra.mxu0 0.0
        %594 = vmatprep.subr.mxu0 0.0
        %595 = vmatpush1.msra.mxu0 0.0
        %596 = vmatprep.subr.mxu0 0.0
        %597 = vmatpush1.msra.mxu0 0.0
        %598 = vmatprep.subr.mxu0 0.0
        %599 = vmatpush1.msra.mxu0 0.0
        %600 = vmatprep.subr.mxu0 0.0
        %601 = vmatpush1.msra.mxu0 0.0
        %602 = vmatprep.subr.mxu0 0.0
        %603 = vmatpush1.msra.mxu0 0.0
        %604 = vmatprep.mubr.f32.mxu0 0.0
        %605 = vmatmul.mubr.f32.gmra.mrb[0].mxu0 %v538
        %v606 = vpop.f32.mrb[0].mxu0
        %v607 = vadd.f32 %v535, %v606
        %v608 = vpop.f32.mrb[0].mxu0
        %609 = vdwg.mxu0
        %v610 = vxor.u32 %v607, 2147483648
        %v611 = vmul.f32 %v610, 1.442695
        %v612 = vpow.pop %v611
        %v613 = vadd.f32 %v612, 1.0
        %v614 = vrcp.pop %v613
        %v615 = vmul.f32 1.0, %v614
        %v616 = vtanh.pop %v607
        %v617 = vmul.f32 %v615, %v534
        %619 = vrot.lane.b32.xlu0 %v616, 64
        %v620 = vpop.permute.xlu0 %619
        %v622 = vmul.f32 %v532, %v620
        %v623 = vadd.f32 %v617, %v622
        %v624 = vtanh.pop %v623
        %626 = vrot.lane.b32.xlu0 %v624, 32
        %v627 = vpop.permute.xlu0 %626
        %v629 = vmul.f32 %v615, %v627
        %631 = vrot.lane.b32.xlu0 %v629, 96
        %v632 = vpop.permute.xlu0 %631
        %vm634 = vcmask 254976
        %635 = vst.msk [vmem:[%s408] sm:$0x3] %vm634, %v632
        %636 = vst.msk [vmem:[%s415] sm:$0x3] %vm634, %v623
        %s637 = scalar_lea.vmem %s364, 2 [#allocation6]
        %v638 = vld [vmem:[%s637] sm:$0x3]
        %v639 = vsel %vm536, %v632, 0
        %641 = vmatprep.subr.mxu0 0.0
        %642 = vmatpush1.msra.mxu0 %v528
        %643 = vmatprep.subr.mxu0 0.0
        %644 = vmatpush1.msra.mxu0 %v529
        %645 = vmatprep.subr.mxu0 0.0
        %646 = vmatpush1.msra.mxu0 %v530
        %647 = vmatprep.subr.mxu0 0.0
        %648 = vmatpush1.msra.mxu0 %v531
        %649 = vmatprep.subr.mxu0 0.0
        %650 = vmatpush1.msra.mxu0 0.0
        %651 = vmatprep.subr.mxu0 0.0
        %652 = vmatpush1.msra.mxu0 0.0
        %653 = vmatprep.subr.mxu0 0.0
        %654 = vmatpush1.msra.mxu0 0.0
        %655 = vmatprep.subr.mxu0 0.0
        %656 = vmatpush1.msra.mxu0 0.0
        %657 = vmatprep.subr.mxu0 0.0
        %658 = vmatpush1.msra.mxu0 0.0
        %659 = vmatprep.subr.mxu0 0.0
        %660 = vmatpush1.msra.mxu0 0.0
        %661 = vmatprep.subr.mxu0 0.0
        %662 = vmatpush1.msra.mxu0 0.0
        %663 = vmatprep.subr.mxu0 0.0
        %664 = vmatpush1.msra.mxu0 0.0
        %665 = vmatprep.subr.mxu0 0.0
        %666 = vmatpush1.msra.mxu0 0.0
        %667 = vmatprep.subr.mxu0 0.0
        %668 = vmatpush1.msra.mxu0 0.0
        %669 = vmatprep.subr.mxu0 0.0
        %670 = vmatpush1.msra.mxu0 0.0
        %671 = vmatprep.subr.mxu0 0.0
        %672 = vmatpush1.msra.mxu0 0.0
        %673 = vmatprep.subr.mxu0 0.0
        %674 = vmatpush1.msra.mxu0 0.0
        %675 = vmatprep.subr.mxu0 0.0
        %676 = vmatpush1.msra.mxu0 0.0
        %677 = vmatprep.subr.mxu0 0.0
        %678 = vmatpush1.msra.mxu0 0.0
        %679 = vmatprep.subr.mxu0 0.0
        %680 = vmatpush1.msra.mxu0 0.0
        %681 = vmatprep.subr.mxu0 0.0
        %682 = vmatpush1.msra.mxu0 0.0
        %683 = vmatprep.subr.mxu0 0.0
        %684 = vmatpush1.msra.mxu0 0.0
        %685 = vmatprep.subr.mxu0 0.0
        %686 = vmatpush1.msra.mxu0 0.0
        %687 = vmatprep.subr.mxu0 0.0
        %688 = vmatpush1.msra.mxu0 0.0
        %689 = vmatprep.subr.mxu0 0.0
        %690 = vmatpush1.msra.mxu0 0.0
        %691 = vmatprep.subr.mxu0 0.0
        %692 = vmatpush1.msra.mxu0 0.0
        %693 = vmatprep.subr.mxu0 0.0
        %694 = vmatpush1.msra.mxu0 0.0
        %695 = vmatprep.subr.mxu0 0.0
        %696 = vmatpush1.msra.mxu0 0.0
        %697 = vmatprep.subr.mxu0 0.0
        %698 = vmatpush1.msra.mxu0 0.0
        %699 = vmatprep.subr.mxu0 0.0
        %700 = vmatpush1.msra.mxu0 0.0
        %701 = vmatprep.subr.mxu0 0.0
        %702 = vmatpush1.msra.mxu0 0.0
        %703 = vmatprep.subr.mxu0 0.0
        %704 = vmatpush1.msra.mxu0 0.0
        %705 = vmatprep.mubr.f32.mxu0 0.0
        %706 = vmatmul.mubr.f32.gmra.mrb[0].mxu0 %v639
        %v707 = vpop.f32.mrb[0].mxu0
        %v708 = vadd.f32 %v638, %v707
        %v709 = vpop.f32.mrb[0].mxu0
        %710 = vdwg.mxu0
        %v711 = vxor.u32 %v708, 2147483648
        %v712 = vmul.f32 %v711, 1.442695
        %v713 = vpow.pop %v712
        %v714 = vadd.f32 %v713, 1.0
        %v715 = vrcp.pop %v714
        %v716 = vmul.f32 1.0, %v715
        %v717 = vtanh.pop %v708
        %v718 = vmul.f32 %v716, %v623
        %720 = vrot.lane.b32.xlu0 %v717, 64
        %v721 = vpop.permute.xlu0 %720
        %v723 = vmul.f32 %v532, %v721
        %v724 = vadd.f32 %v718, %v723
        %v725 = vtanh.pop %v724
        %727 = vrot.lane.b32.xlu0 %v725, 32
        %v728 = vpop.permute.xlu0 %727
        %v730 = vmul.f32 %v716, %v728
        %732 = vrot.lane.b32.xlu0 %v730, 96
        %v733 = vpop.permute.xlu0 %732
        %s735 = scalar_lea.vmem %s408, 2 [#allocation11]
        %736 = vst.msk [vmem:[%s735] sm:$0x3] %vm634, %v733
        %s737 = scalar_lea.vmem %s415, 2 [#allocation12]
        %738 = vst.msk [vmem:[%s737] sm:$0x3] %vm634, %v724
        %s739 = scalar_lea.vmem %s364, 4 [#allocation6]
        %v740 = vld [vmem:[%s739] sm:$0x3]
        %v741 = vsel %vm536, %v733, 0
        %743 = vmatprep.subr.mxu0 0.0
        %744 = vmatpush1.msra.mxu0 %v528
        %745 = vmatprep.subr.mxu0 0.0
        %746 = vmatpush1.msra.mxu0 %v529
        %747 = vmatprep.subr.mxu0 0.0
        %748 = vmatpush1.msra.mxu0 %v530
        %749 = vmatprep.subr.mxu0 0.0
        %750 = vmatpush1.msra.mxu0 %v531
        %751 = vmatprep.subr.mxu0 0.0
        %752 = vmatpush1.msra.mxu0 0.0
        %753 = vmatprep.subr.mxu0 0.0
        %754 = vmatpush1.msra.mxu0 0.0
        %755 = vmatprep.subr.mxu0 0.0
        %756 = vmatpush1.msra.mxu0 0.0
        %757 = vmatprep.subr.mxu0 0.0
        %758 = vmatpush1.msra.mxu0 0.0
        %759 = vmatprep.subr.mxu0 0.0
        %760 = vmatpush1.msra.mxu0 0.0
        %761 = vmatprep.subr.mxu0 0.0
        %762 = vmatpush1.msra.mxu0 0.0
        %763 = vmatprep.subr.mxu0 0.0
        %764 = vmatpush1.msra.mxu0 0.0
        %765 = vmatprep.subr.mxu0 0.0
        %766 = vmatpush1.msra.mxu0 0.0
        %767 = vmatprep.subr.mxu0 0.0
        %768 = vmatpush1.msra.mxu0 0.0
        %769 = vmatprep.subr.mxu0 0.0
        %770 = vmatpush1.msra.mxu0 0.0
        %771 = vmatprep.subr.mxu0 0.0
        %772 = vmatpush1.msra.mxu0 0.0
        %773 = vmatprep.subr.mxu0 0.0
        %774 = vmatpush1.msra.mxu0 0.0
        %775 = vmatprep.subr.mxu0 0.0
        %776 = vmatpush1.msra.mxu0 0.0
        %777 = vmatprep.subr.mxu0 0.0
        %778 = vmatpush1.msra.mxu0 0.0
        %779 = vmatprep.subr.mxu0 0.0
        %780 = vmatpush1.msra.mxu0 0.0
        %781 = vmatprep.subr.mxu0 0.0
        %782 = vmatpush1.msra.mxu0 0.0
        %783 = vmatprep.subr.mxu0 0.0
        %784 = vmatpush1.msra.mxu0 0.0
        %785 = vmatprep.subr.mxu0 0.0
        %786 = vmatpush1.msra.mxu0 0.0
        %787 = vmatprep.subr.mxu0 0.0
        %788 = vmatpush1.msra.mxu0 0.0
        %789 = vmatprep.subr.mxu0 0.0
        %790 = vmatpush1.msra.mxu0 0.0
        %791 = vmatprep.subr.mxu0 0.0
        %792 = vmatpush1.msra.mxu0 0.0
        %793 = vmatprep.subr.mxu0 0.0
        %794 = vmatpush1.msra.mxu0 0.0
        %795 = vmatprep.subr.mxu0 0.0
        %796 = vmatpush1.msra.mxu0 0.0
        %797 = vmatprep.subr.mxu0 0.0
        %798 = vmatpush1.msra.mxu0 0.0
        %799 = vmatprep.subr.mxu0 0.0
        %800 = vmatpush1.msra.mxu0 0.0
        %801 = vmatprep.subr.mxu0 0.0
        %802 = vmatpush1.msra.mxu0 0.0
        %803 = vmatprep.subr.mxu0 0.0
        %804 = vmatpush1.msra.mxu0 0.0
        %805 = vmatprep.subr.mxu0 0.0
        %806 = vmatpush1.msra.mxu0 0.0
        %807 = vmatprep.mubr.f32.mxu0 0.0
        %808 = vmatmul.mubr.f32.gmra.mrb[0].mxu0 %v741
        %v809 = vpop.f32.mrb[0].mxu0
        %v810 = vadd.f32 %v740, %v809
        %v811 = vpop.f32.mrb[0].mxu0
        %812 = vdwg.mxu0
        %v813 = vxor.u32 %v810, 2147483648
        %v814 = vmul.f32 %v813, 1.442695
        %v815 = vpow.pop %v814
        %v816 = vadd.f32 %v815, 1.0
        %v817 = vrcp.pop %v816
        %v818 = vmul.f32 1.0, %v817
        %v819 = vtanh.pop %v810
        %v820 = vmul.f32 %v818, %v724
        %822 = vrot.lane.b32.xlu0 %v819, 64
        %v823 = vpop.permute.xlu0 %822
        %v825 = vmul.f32 %v532, %v823
        %v826 = vadd.f32 %v820, %v825
        %v827 = vtanh.pop %v826
        %829 = vrot.lane.b32.xlu0 %v827, 32
        %v830 = vpop.permute.xlu0 %829
        %v832 = vmul.f32 %v818, %v830
        %834 = vrot.lane.b32.xlu0 %v832, 96
        %v835 = vpop.permute.xlu0 %834
        %s837 = scalar_lea.vmem %s408, 4 [#allocation11]
        %838 = vst.msk [vmem:[%s837] sm:$0x3] %vm634, %v835
        %s839 = scalar_lea.vmem %s415, 4 [#allocation12]
        %840 = vst.msk [vmem:[%s839] sm:$0x3] %vm634, %v826
        %s841 = scalar_lea.vmem %s364, 6 [#allocation6]
        %v842 = vld [vmem:[%s841] sm:$0x3]
        %v843 = vsel %vm536, %v835, 0
        %845 = vmatprep.subr.mxu0 0.0
        %846 = vmatpush1.msra.mxu0 %v528
        %847 = vmatprep.subr.mxu0 0.0
        %848 = vmatpush1.msra.mxu0 %v529
        %849 = vmatprep.subr.mxu0 0.0
        %850 = vmatpush1.msra.mxu0 %v530
        %851 = vmatprep.subr.mxu0 0.0
        %852 = vmatpush1.msra.mxu0 %v531
        %853 = vmatprep.subr.mxu0 0.0
        %854 = vmatpush1.msra.mxu0 0.0
        %855 = vmatprep.subr.mxu0 0.0
        %856 = vmatpush1.msra.mxu0 0.0
        %857 = vmatprep.subr.mxu0 0.0
        %858 = vmatpush1.msra.mxu0 0.0
        %859 = vmatprep.subr.mxu0 0.0
        %860 = vmatpush1.msra.mxu0 0.0
        %861 = vmatprep.subr.mxu0 0.0
        %862 = vmatpush1.msra.mxu0 0.0
        %863 = vmatprep.subr.mxu0 0.0
        %864 = vmatpush1.msra.mxu0 0.0
        %865 = vmatprep.subr.mxu0 0.0
        %866 = vmatpush1.msra.mxu0 0.0
        %867 = vmatprep.subr.mxu0 0.0
        %868 = vmatpush1.msra.mxu0 0.0
        %869 = vmatprep.subr.mxu0 0.0
        %870 = vmatpush1.msra.mxu0 0.0
        %871 = vmatprep.subr.mxu0 0.0
        %872 = vmatpush1.msra.mxu0 0.0
        %873 = vmatprep.subr.mxu0 0.0
        %874 = vmatpush1.msra.mxu0 0.0
        %875 = vmatprep.subr.mxu0 0.0
        %876 = vmatpush1.msra.mxu0 0.0
        %877 = vmatprep.subr.mxu0 0.0
        %878 = vmatpush1.msra.mxu0 0.0
        %879 = vmatprep.subr.mxu0 0.0
        %880 = vmatpush1.msra.mxu0 0.0
        %881 = vmatprep.subr.mxu0 0.0
        %882 = vmatpush1.msra.mxu0 0.0
        %883 = vmatprep.subr.mxu0 0.0
        %884 = vmatpush1.msra.mxu0 0.0
        %885 = vmatprep.subr.mxu0 0.0
        %886 = vmatpush1.msra.mxu0 0.0
        %887 = vmatprep.subr.mxu0 0.0
        %888 = vmatpush1.msra.mxu0 0.0
        %889 = vmatprep.subr.mxu0 0.0
        %890 = vmatpush1.msra.mxu0 0.0
        %891 = vmatprep.subr.mxu0 0.0
        %892 = vmatpush1.msra.mxu0 0.0
        %893 = vmatprep.subr.mxu0 0.0
        %894 = vmatpush1.msra.mxu0 0.0
        %895 = vmatprep.subr.mxu0 0.0
        %896 = vmatpush1.msra.mxu0 0.0
        %897 = vmatprep.subr.mxu0 0.0
        %898 = vmatpush1.msra.mxu0 0.0
        %899 = vmatprep.subr.mxu0 0.0
        %900 = vmatpush1.msra.mxu0 0.0
        %901 = vmatprep.subr.mxu0 0.0
        %902 = vmatpush1.msra.mxu0 0.0
        %903 = vmatprep.subr.mxu0 0.0
        %904 = vmatpush1.msra.mxu0 0.0
        %905 = vmatprep.subr.mxu0 0.0
        %906 = vmatpush1.msra.mxu0 0.0
        %907 = vmatprep.subr.mxu0 0.0
        %908 = vmatpush1.msra.mxu0 0.0
        %909 = vmatprep.mubr.f32.mxu0 0.0
        %910 = vmatmul.mubr.f32.gmra.mrb[0].mxu0 %v843
        %v911 = vpop.f32.mrb[0].mxu0
        %v912 = vadd.f32 %v842, %v911
        %v913 = vpop.f32.mrb[0].mxu0
        %914 = vdwg.mxu0
        %v915 = vxor.u32 %v912, 2147483648
        %v916 = vmul.f32 %v915, 1.442695
        %v917 = vpow.pop %v916
        %v918 = vadd.f32 %v917, 1.0
        %v919 = vrcp.pop %v918
        %v920 = vmul.f32 1.0, %v919
        %v921 = vtanh.pop %v912
        %v922 = vmul.f32 %v920, %v826
        %924 = vrot.lane.b32.xlu0 %v921, 64
        %v925 = vpop.permute.xlu0 %924
        %v927 = vmul.f32 %v532, %v925
        %v928 = vadd.f32 %v922, %v927
        %v929 = vtanh.pop %v928
        %931 = vrot.lane.b32.xlu0 %v929, 32
        %v932 = vpop.permute.xlu0 %931
        %v934 = vmul.f32 %v920, %v932
        %936 = vrot.lane.b32.xlu0 %v934, 96
        %v937 = vpop.permute.xlu0 %936
        %s939 = scalar_lea.vmem %s408, 6 [#allocation11]
        %940 = vst.msk [vmem:[%s939] sm:$0x3] %vm634, %v937
        %s941 = scalar_lea.vmem %s415, 6 [#allocation12]
        %942 = vst.msk [vmem:[%s941] sm:$0x3] %vm634, %v928
        %943 = vst.msk [vmem:[#allocation2] sm:$0x3] %vm634, %v937
        %944 = vst.msk [vmem:[#allocation3] sm:$0x3] %vm634, %v928
        %p945 = scmp.eq.s32.totalorder %s37, 1
        // Predicated region
        $region61: #{tpu_custom_call.1} parent=47 // pred_check
          %p946 = pneg %p945
        $region62: #{tpu_custom_call.1} parent=47 // pred_check_branch
          %948 = sbr.rel (%p946) target = $region64
        $region63: #{tpu_custom_call.1} parent=47 // pred_region
          %v949 = vld [vmem:[%s5] sm:$0x1]
          %v951 = vlaneseq
          %v952 = vshrl.u32 %v951, 7
          %v953 = vsub.s32 0, %v952
          %v954 = vrot.slane %v949, %v953
          %955 = vrot.lane.b32.xlu0 %v954, 32
          %v956 = vpop.permute.xlu0 %955
          %v958 = vmul.f32 %v934, %v956
          %960 = vrot.lane.b32.xlu0 %v958, 96
          %v961 = vpop.permute.xlu0 %960
          %v963 = vsel %vm634, %v961, 0.0
          %964 = vadd.xlane.f32.xlu0 %v963
          %v965 = vpop.xlane.xlu0 %964
          %s966 = sld [smem:[#allocation5]]
          %v967 = vstv %s966
          %v968 = vadd.f32 %v965, %v967
          %vm969 = vcmask 1024
          %970 = vst.msk [vmem:[%s424] sm:$0x3] %vm969, %v968
        $region64: #{tpu_custom_call.1} parent=47 // pred_fallthru
          _
        %p971 = scmp.lt.s32.totalorder %s36, 0
        %s972 = scalar_select %p971, %s36, 0
        %s973 = smul.addr %s972, 2
        %s974 = scalar_lea.vmem %s7, %s973
        %s975 = sand.u32 %s239, 1
        %s976 = scalar_lea.sflag [#allocation8], %s975
        %s977 = sand.u32 %s239, 1
        %s978 = smul.addr %s977, 8
        %s979 = scalar_lea.vmem [#allocation11], %s978
        %s980 = sand.u32 %s267, 1
        %s981 = scalar_lea.sflag [#allocation13], %s980
        %s982 = sand.u32 %s267, 1
        %s983 = smul.addr %s982, 8
        %s984 = scalar_lea.vmem [#allocation12], %s983
        // Predicated region
        $region65: #{tpu_custom_call.1} parent=47 // pred_check
          %p985 = pneg %p221
        $region66: #{tpu_custom_call.1} parent=47 // pred_check_branch
          %987 = sbr.rel (%p985) target = $region68
        $region67: #{tpu_custom_call.1} parent=47 // pred_region
          _
        $region68: #{tpu_custom_call.1} parent=47 // pred_fallthru
          _
        // Predicated region
        $region69: #{tpu_custom_call.1} parent=47 // pred_check
          %p988 = pneg %p249
        $region70: #{tpu_custom_call.1} parent=47 // pred_check_branch
          %990 = sbr.rel (%p988) target = $region72
        $region71: #{tpu_custom_call.1} parent=47 // pred_region
          %s991 = smul.u32 4, %s37
          %s993 = ssub.s32 128, 128
          %994 = vsyncadd %s976, %s993
          %s995 = sadd.s32 %s36, %s991
          %s996 = smul.addr %s995, 32
          %s997 = scalar_lea.hbm %s8, %s996
          %s998 = sshll.u32 %s979, 4
          %s999 = int_to_ptr.vmem [resolvable:$true] %s998
          %1004 = dma.vmem_to_hbm [thread:$0]  %s999, 128, %s997, %s976, 32, 32, 2
        $region72: #{tpu_custom_call.1} parent=47 // pred_fallthru
          _
        // Predicated region
        $region73: #{tpu_custom_call.1} parent=47 // pred_check
          %p1005 = pneg %p277
        $region74: #{tpu_custom_call.1} parent=47 // pred_check_branch
          %1007 = sbr.rel (%p1005) target = $region76
        $region75: #{tpu_custom_call.1} parent=47 // pred_region
          %s1008 = smul.u32 4, %s37
          %s1010 = ssub.s32 128, 128
          %1011 = vsyncadd %s981, %s1010
          %s1012 = sadd.s32 %s36, %s1008
          %s1013 = smul.addr %s1012, 32
          %s1014 = scalar_lea.hbm %s9, %s1013
          %s1015 = sshll.u32 %s984, 4
          %s1016 = int_to_ptr.vmem [resolvable:$true] %s1015
          %1021 = dma.vmem_to_hbm [thread:$0]  %s1016, 128, %s1014, %s981, 32, 32, 2
        $region76: #{tpu_custom_call.1} parent=47 // pred_fallthru
          _
        // Predicated region
        $region77: #{tpu_custom_call.1} parent=47 // pred_check
          %p1022 = pneg %p221
        $region78: #{tpu_custom_call.1} parent=47 // pred_check_branch
          %1024 = sbr.rel (%p1022) target = $region80
        $region79: #{tpu_custom_call.1} parent=47 // pred_region
          %p1025 = scmp.lt.s32.totalorder %s36, 0
          %s1026 = scalar_select %p1025, %s36, 0
          %s1027 = smul.addr %s1026, 2
          %s1028 = scalar_lea.vmem %s7, %s1027
        $region80: #{tpu_custom_call.1} parent=47 // pred_fallthru
          _
      $region48: #{tpu_custom_call.1} parent=5 // pred_fallthru
        _
      %p1029 = scmp.le.s32.totalorder 2, %s27
      // Predicated region
      $region81: #{tpu_custom_call.1} parent=5 // pred_check
        %p1030 = pneg %p1029
      $region82: #{tpu_custom_call.1} parent=5 // pred_check_branch
        %1032 = sbr.rel (%p1030) target = $region84
      $region83: #{tpu_custom_call.1} parent=5 // pred_region
        %s1033 = ssub.s32 %s27, 2
        // Predicated region
        $region85: #{tpu_custom_call.1} parent=83 // pred_check
          %p1034 = pneg %p255
        $region86: #{tpu_custom_call.1} parent=83 // pred_check_branch
          %1036 = sbr.rel (%p1034) target = $region88
        $region87: #{tpu_custom_call.1} parent=83 // pred_region
          %s1037 = sand.u32 %s240, 1
          %s1038 = scalar_lea.sflag [#allocation8], %s1037
          %s1039 = sand.u32 %s240, 1
          %s1040 = smul.addr %s1039, 8
          %s1041 = scalar_lea.vmem [#allocation11], %s1040
          %1042 = dma.done %s1038, 128
        $region88: #{tpu_custom_call.1} parent=83 // pred_fallthru
          _
        // Predicated region
        $region89: #{tpu_custom_call.1} parent=83 // pred_check
          %p1043 = pneg %p283
        $region90: #{tpu_custom_call.1} parent=83 // pred_check_branch
          %1045 = sbr.rel (%p1043) target = $region92
        $region91: #{tpu_custom_call.1} parent=83 // pred_region
          %s1046 = sand.u32 %s268, 1
          %s1047 = scalar_lea.sflag [#allocation13], %s1046
          %s1048 = sand.u32 %s268, 1
          %s1049 = smul.addr %s1048, 8
          %s1050 = scalar_lea.vmem [#allocation12], %s1049
          %1051 = dma.done %s1047, 128
        $region92: #{tpu_custom_call.1} parent=83 // pred_fallthru
          _
      $region84: #{tpu_custom_call.1} parent=5 // pred_fallthru
        _
    $region6: #{tpu_custom_call.1} parent=1 // loop_footer
      %s31 = sadd.s32 1, %s27
    $region7: #{tpu_custom_call.1} parent=1 // loop_footer_branch
      %26 = sbr.rel target = $region3
    $region8: #{tpu_custom_call.1} parent=1 // loop_exit
      _
    %1052 = vsyncpa [#allocation7], 1
    %s1053 = scalar_lea.sflag [#allocation7], 1
    %1054 = vsyncpa %s1053, 1
    %1055 = vsyncpa [#allocation10], 1
    %1056 = vsyncpa [#allocation8], 1
    %s1057 = scalar_lea.sflag [#allocation8], 1
    %1058 = vsyncpa %s1057, 1
    %1059 = vsyncpa [#allocation13], 1
    %s1060 = scalar_lea.sflag [#allocation13], 1
    %1061 = vsyncpa %s1060, 1

</llo_original>
